<compile_context>
chip_gen: v7x
topology: tpu7x:2x2x1
jax: 0.10.0
libtpu: 0.0.40
codegen_flags: <defaults>
</compile_context>

<pallas_src>
import jax
import jax.numpy as jnp
from jax.experimental import pallas as pl
from jax.experimental.pallas import tpu as pltpu

H_PAD = 128        # lane-padded hidden width (logical hidden = 64)
LANE = 128         # TPU lane width


def _round_up(n, m):
    return ((n + m - 1) // m) * m


def _pad2(x, shape, dtype=None):
    """Zero-pad a 2-D array up to `shape` (and optionally cast)."""
    out = jnp.pad(x, [(0, t - s) for s, t in zip(x.shape, shape)])
    return out if dtype is None else out.astype(dtype)


def _has_bf16_vpu():
    """bf16 VALU exists on v6e/v7x; keep f32 elementwise math on v2-v5."""
    try:
        kind = jax.devices()[0].device_kind.lower()
    except Exception:
        return False
    return not any(g in kind for g in ("v2", "v3", "v4", "v5"))


def _make_kernel(n_act, bf16_fc1):
    act_dt = jnp.bfloat16 if bf16_fc1 else jnp.float32

    def kernel(x_ref, w1_ref, b1_ref, w2_ref, b2_ref, w3_ref, b3_ref, out_ref):
        # x: (TB, S) f32, S tiny (e.g. 4).  w1: (S, H_PAD) act_dt,
        # w2: (H_PAD, H_PAD) bf16, w3: (H_PAD, A_pad) bf16,
        # b1: (1, H_PAD) act_dt, b2: (1, H_PAD) f32, b3: (1, A_pad) f32.
        x = x_ref[...]                       # (TB, S) f32
        w1 = w1_ref[...]                     # (S, H_PAD) act_dt

        # fc1 on the VPU: K = S is tiny, so S rank-1 broadcast FMAs beat an MXU
        # matmul at <4% contraction depth.  bf16 (v6e/v7x) halves VALU work.
        s = x.shape[1]
        h1 = x[:, 0:1].astype(act_dt) * w1[0:1, :]
        for k in range(1, s):                # static unroll, S is tiny
            h1 = h1 + x[:, k:k + 1].astype(act_dt) * w1[k:k + 1, :]
        h1 = jnp.maximum(h1 + b1_ref[...], 0.0).astype(jnp.bfloat16)

        # fc2 + ReLU: bf16 MXU operands, f32 accumulation, f32 epilogue.
        h2 = jnp.dot(h1, w2_ref[...],
                     preferred_element_type=jnp.float32) + b2_ref[...]
        h2 = jnp.maximum(h2, 0.0).astype(jnp.bfloat16)

        # fc3: lane-dense (TB, A_pad) MXU matmul, then a NARROW lane-masked
        # store of only the real action columns (no padded HBM output).
        q = jnp.dot(h2, w3_ref[...],
                    preferred_element_type=jnp.float32) + b3_ref[...]
        out_ref[...] = q[:, :n_act].astype(out_ref.dtype)

    return kernel


def _choose_tb(batch):
    """Rows per grid block: a single full-extent block for small batches,
    otherwise a multiple of 256 (MXU M tile) capped at 1024, chosen so there
    are >= 2 blocks and v7x can shard them across its two TensorCores."""
    if batch < 512:
        return batch                         # full-extent first dim is always legal
    return min(1024, _round_up(pl.cdiv(batch, 2), 256))


def dqn_forward(state, params, *, bf16_fc1=None):
    """state: (B, state_size) float.  params: w* of shape (in_features,
    out_features) and b* of shape (1, out_features) — equivalent to PyTorch's
    Linear (x @ W.T + b with W stored (out, in))."""
    if bf16_fc1 is None:
        bf16_fc1 = _has_bf16_vpu()
    fc1_dt = jnp.bfloat16 if bf16_fc1 else jnp.float32

    w1, b1 = params["w1"], params["b1"]
    w2, b2 = params["w2"], params["b2"]
    w3, b3 = params["w3"], params["b3"]

    B, S = state.shape
    A = w3.shape[1]
    A_pad = _round_up(A, LANE)

    # Lane-dense, zero-padded parameters (zeros don't change the math).
    w1p = _pad2(w1, (S, H_PAD), fc1_dt)
    b1p = _pad2(b1, (1, H_PAD), fc1_dt)
    w2p = _pad2(w2, (H_PAD, H_PAD), jnp.bfloat16)
    b2p = _pad2(b2, (1, H_PAD), jnp.float32)
    w3p = _pad2(w3, (H_PAD, A_pad), jnp.bfloat16)
    b3p = _pad2(b3, (1, A_pad), jnp.float32)

    x = state.astype(jnp.float32)            # no-op if already f32 (no extra pass)

    TB = _choose_tb(B)
    grid = (pl.cdiv(B, TB),)                 # ragged tail = clipped edge block

    return pl.pallas_call(
        _make_kernel(A, bf16_fc1),
        out_shape=jax.ShapeDtypeStruct((B, A), jnp.float32),   # narrow output
        grid=grid,
        in_specs=[
            pl.BlockSpec((TB, S), lambda i: (i, 0)),           # x: streamed per block
            pl.BlockSpec((S, H_PAD), lambda i: (0, 0)),        # weights / biases:
            pl.BlockSpec((1, H_PAD), lambda i: (0, 0)),        #   constant index_map
            pl.BlockSpec((H_PAD, H_PAD), lambda i: (0, 0)),    #   -> VMEM-resident
            pl.BlockSpec((1, H_PAD), lambda i: (0, 0)),        #   across batch blocks
            pl.BlockSpec((H_PAD, A_pad), lambda i: (0, 0)),
            pl.BlockSpec((1, A_pad), lambda i: (0, 0)),
        ],
        out_specs=pl.BlockSpec((TB, A), lambda i: (i, 0)),     # last dim == full A
        compiler_params=pltpu.CompilerParams(
            dimension_semantics=("parallel",),   # shard batch blocks across TCs (v7x)
            vmem_limit_bytes=32 * 1024 * 1024,   # per-block footprint << limit
        ),
    )(x, w1p, b1p, w2p, b2p, w3p, b3p)


def init_params(key, state_size, action_size, hidden=64):
    """Mimics PyTorch nn.Linear default init, weights stored (in, out)."""
    ks = jax.random.split(key, 6)

    def linear(kw, kb, fan_in, fan_out):
        bound = 1.0 / jnp.sqrt(jnp.float32(fan_in))
        w = jax.random.uniform(kw, (fan_in, fan_out), jnp.float32, -bound, bound)
        b = jax.random.uniform(kb, (1, fan_out), jnp.float32, -bound, bound)
        return w, b

    w1, b1 = linear(ks[0], ks[1], state_size, hidden)
    w2, b2 = linear(ks[2], ks[3], hidden, hidden)
    w3, b3 = linear(ks[4], ks[5], hidden, action_size)
    return {"w1": w1, "b1": b1, "w2": w2, "b2": b2, "w3": w3, "b3": b3}


def dqn_reference_f32(state, p):
    """Pure-f32 reference (original PyTorch semantics)."""
    h1 = jnp.maximum(state @ p["w1"] + p["b1"], 0.0)
    h2 = jnp.maximum(h1 @ p["w2"] + p["b2"], 0.0)
    return h2 @ p["w3"] + p["b3"]


def dqn_reference_matched(state, p, bf16_fc1):
    """Reference mirroring the kernel's precision choices exactly."""
    fdt = jnp.bfloat16 if bf16_fc1 else jnp.float32
    x = state.astype(jnp.float32)
    w1 = p["w1"].astype(fdt)
    b1 = p["b1"].astype(fdt)
    h1 = x[:, 0:1].astype(fdt) * w1[0:1, :]
    for k in range(1, x.shape[1]):
        h1 = h1 + x[:, k:k + 1].astype(fdt) * w1[k:k + 1, :]
    h1 = jnp.maximum(h1 + b1, 0.0).astype(jnp.bfloat16)
    h2 = jnp.dot(h1, p["w2"].astype(jnp.bfloat16),
                 preferred_element_type=jnp.float32) + p["b2"]
    h2 = jnp.maximum(h2, 0.0).astype(jnp.bfloat16)
    return jnp.dot(h2, p["w3"].astype(jnp.bfloat16),
                   preferred_element_type=jnp.float32) + p["b3"]


if __name__ == "__main__":
    key = jax.random.PRNGKey(0)
    k_x, k_p, k_x2 = jax.random.split(key, 3)

    # Small, module-consistent shapes (CartPole-like: state=4, actions=2).
    batch, state_size, action_size = 2, 4, 2
    params = init_params(k_p, state_size, action_size)
    bf16_fc1 = _has_bf16_vpu()

    state = jax.random.normal(k_x, (batch, state_size), jnp.float32)
    out = jax.block_until_ready(dqn_forward(state, params, bf16_fc1=bf16_fc1))
    assert out.shape == (batch, action_size)
    assert jnp.allclose(out, dqn_reference_matched(state, params, bf16_fc1),
                        atol=2e-2, rtol=2e-2), "mismatch vs matched-precision reference"
    assert jnp.allclose(out, dqn_reference_f32(state, params),
                        atol=1e-1, rtol=1e-1), "mismatch vs f32 reference"

    # Ragged, multi-block batch exercises the grid + clipped-edge-block path.
    batch2 = 777
    state2 = jax.random.normal(k_x2, (batch2, state_size), jnp.float32)
    out2 = jax.block_until_ready(dqn_forward(state2, params, bf16_fc1=bf16_fc1))
    assert out2.shape == (batch2, action_size)
    assert jnp.allclose(out2, dqn_reference_matched(state2, params, bf16_fc1),
                        atol=2e-2, rtol=2e-2), "mismatch vs reference (ragged batch)"

    print("KERNEL_OK")
</pallas_src>

<mosaic_0001>
module attributes {stable_mosaic.version = 11 : i64} {
  func.func @kernel(%arg0: i32, %arg1: memref<2x4xf32, #tpu.memory_space<vmem>>, %arg2: memref<4x128xbf16, #tpu.memory_space<vmem>>, %arg3: memref<1x128xbf16, #tpu.memory_space<vmem>>, %arg4: memref<128x128xbf16, #tpu.memory_space<vmem>>, %arg5: memref<1x128xf32, #tpu.memory_space<vmem>>, %arg6: memref<128x128xbf16, #tpu.memory_space<vmem>>, %arg7: memref<1x128xf32, #tpu.memory_space<vmem>>, %arg8: memref<2x2xf32, #tpu.memory_space<vmem>>) attributes {dimension_semantics = [#tpu.dimension_semantics<parallel>], iteration_bounds = array<i64: 1>, scalar_prefetch = 0 : i64, scratch_operands = 0 : i64, tpu.core_type = #tpu.core_type<tc>, window_params = [{transform_indices = @transform_0, window_bounds = array<i64: 2, 4>}, {pipeline_mode = #tpu.pipeline_mode<synchronous>, transform_indices = @transform_1, window_bounds = array<i64: 4, 128>}, {pipeline_mode = #tpu.pipeline_mode<synchronous>, transform_indices = @transform_2, window_bounds = array<i64: 1, 128>}, {pipeline_mode = #tpu.pipeline_mode<synchronous>, transform_indices = @transform_3, window_bounds = array<i64: 128, 128>}, {pipeline_mode = #tpu.pipeline_mode<synchronous>, transform_indices = @transform_4, window_bounds = array<i64: 1, 128>}, {pipeline_mode = #tpu.pipeline_mode<synchronous>, transform_indices = @transform_5, window_bounds = array<i64: 128, 128>}, {pipeline_mode = #tpu.pipeline_mode<synchronous>, transform_indices = @transform_6, window_bounds = array<i64: 1, 128>}, {transform_indices = @transform_7, window_bounds = array<i64: 2, 2>}]} {
    %c0 = arith.constant 0 : index
    %c0_0 = arith.constant 0 : index
    %0 = vector.load %arg1[%c0, %c0_0] : memref<2x4xf32, #tpu.memory_space<vmem>>, vector<2x4xf32>
    %c0_1 = arith.constant 0 : index
    %c0_2 = arith.constant 0 : index
    %1 = vector.load %arg2[%c0_1, %c0_2] : memref<4x128xbf16, #tpu.memory_space<vmem>>, vector<4x128xbf16>
    %2 = vector.extract_strided_slice %0 {offsets = [0, 0], sizes = [2, 1], strides = [1, 1]} : vector<2x4xf32> to vector<2x1xf32>
    %3 = arith.truncf %2 : vector<2x1xf32> to vector<2x1xbf16>
    %4 = vector.extract_strided_slice %1 {offsets = [0, 0], sizes = [1, 128], strides = [1, 1]} : vector<4x128xbf16> to vector<1x128xbf16>
    %5 = vector.broadcast %3 : vector<2x1xbf16> to vector<2x128xbf16>
    %6 = vector.broadcast %4 : vector<1x128xbf16> to vector<2x128xbf16>
    %7 = arith.mulf %5, %6 : vector<2x128xbf16>
    %8 = vector.extract_strided_slice %0 {offsets = [0, 1], sizes = [2, 1], strides = [1, 1]} : vector<2x4xf32> to vector<2x1xf32>
    %9 = arith.truncf %8 : vector<2x1xf32> to vector<2x1xbf16>
    %10 = vector.extract_strided_slice %1 {offsets = [1, 0], sizes = [1, 128], strides = [1, 1]} : vector<4x128xbf16> to vector<1x128xbf16>
    %11 = vector.broadcast %9 : vector<2x1xbf16> to vector<2x128xbf16>
    %12 = vector.broadcast %10 : vector<1x128xbf16> to vector<2x128xbf16>
    %13 = arith.mulf %11, %12 : vector<2x128xbf16>
    %14 = arith.addf %7, %13 : vector<2x128xbf16>
    %15 = vector.extract_strided_slice %0 {offsets = [0, 2], sizes = [2, 1], strides = [1, 1]} : vector<2x4xf32> to vector<2x1xf32>
    %16 = arith.truncf %15 : vector<2x1xf32> to vector<2x1xbf16>
    %17 = vector.extract_strided_slice %1 {offsets = [2, 0], sizes = [1, 128], strides = [1, 1]} : vector<4x128xbf16> to vector<1x128xbf16>
    %18 = vector.broadcast %16 : vector<2x1xbf16> to vector<2x128xbf16>
    %19 = vector.broadcast %17 : vector<1x128xbf16> to vector<2x128xbf16>
    %20 = arith.mulf %18, %19 : vector<2x128xbf16>
    %21 = arith.addf %14, %20 : vector<2x128xbf16>
    %22 = vector.extract_strided_slice %0 {offsets = [0, 3], sizes = [2, 1], strides = [1, 1]} : vector<2x4xf32> to vector<2x1xf32>
    %23 = arith.truncf %22 : vector<2x1xf32> to vector<2x1xbf16>
    %24 = vector.extract_strided_slice %1 {offsets = [3, 0], sizes = [1, 128], strides = [1, 1]} : vector<4x128xbf16> to vector<1x128xbf16>
    %25 = vector.broadcast %23 : vector<2x1xbf16> to vector<2x128xbf16>
    %26 = vector.broadcast %24 : vector<1x128xbf16> to vector<2x128xbf16>
    %27 = arith.mulf %25, %26 : vector<2x128xbf16>
    %28 = arith.addf %21, %27 : vector<2x128xbf16>
    %c0_3 = arith.constant 0 : index
    %c0_4 = arith.constant 0 : index
    %29 = vector.load %arg3[%c0_3, %c0_4] : memref<1x128xbf16, #tpu.memory_space<vmem>>, vector<1x128xbf16>
    %30 = vector.broadcast %29 : vector<1x128xbf16> to vector<2x128xbf16>
    %31 = arith.addf %28, %30 : vector<2x128xbf16>
    %cst = arith.constant 0.000000e+00 : bf16
    %32 = vector.broadcast %cst : bf16 to vector<2x128xbf16>
    %33 = arith.maximumf %31, %32 : vector<2x128xbf16>
    %c0_5 = arith.constant 0 : index
    %c0_6 = arith.constant 0 : index
    %34 = vector.load %arg4[%c0_5, %c0_6] : memref<128x128xbf16, #tpu.memory_space<vmem>>, vector<128x128xbf16>
    %cst_7 = arith.constant dense<0.000000e+00> : vector<2x128xf32>
    %35 = tpu.matmul %33, %34, %cst_7 {dimension_numbers = #tpu.dot_dimension_numbers<[1], [0], [0], [1], [0, 0, 1, 1], [], []>} : vector<2x128xbf16>, vector<128x128xbf16>, vector<2x128xf32> -> vector<2x128xf32>
    %c0_8 = arith.constant 0 : index
    %c0_9 = arith.constant 0 : index
    %36 = vector.load %arg5[%c0_8, %c0_9] : memref<1x128xf32, #tpu.memory_space<vmem>>, vector<1x128xf32>
    %37 = vector.broadcast %36 : vector<1x128xf32> to vector<2x128xf32>
    %38 = arith.addf %35, %37 : vector<2x128xf32>
    %cst_10 = arith.constant 0.000000e+00 : f32
    %39 = vector.broadcast %cst_10 : f32 to vector<2x128xf32>
    %40 = arith.maximumf %38, %39 : vector<2x128xf32>
    %41 = arith.truncf %40 : vector<2x128xf32> to vector<2x128xbf16>
    %c0_11 = arith.constant 0 : index
    %c0_12 = arith.constant 0 : index
    %42 = vector.load %arg6[%c0_11, %c0_12] : memref<128x128xbf16, #tpu.memory_space<vmem>>, vector<128x128xbf16>
    %cst_13 = arith.constant dense<0.000000e+00> : vector<2x128xf32>
    %43 = tpu.matmul %41, %42, %cst_13 {dimension_numbers = #tpu.dot_dimension_numbers<[1], [0], [0], [1], [0, 0, 1, 1], [], []>} : vector<2x128xbf16>, vector<128x128xbf16>, vector<2x128xf32> -> vector<2x128xf32>
    %c0_14 = arith.constant 0 : index
    %c0_15 = arith.constant 0 : index
    %44 = vector.load %arg7[%c0_14, %c0_15] : memref<1x128xf32, #tpu.memory_space<vmem>>, vector<1x128xf32>
    %45 = vector.broadcast %44 : vector<1x128xf32> to vector<2x128xf32>
    %46 = arith.addf %43, %45 : vector<2x128xf32>
    %47 = vector.extract_strided_slice %46 {offsets = [0, 0], sizes = [2, 2], strides = [1, 1]} : vector<2x128xf32> to vector<2x2xf32>
    %c0_16 = arith.constant 0 : index
    %c0_17 = arith.constant 0 : index
    %48 = vector.load %arg8[%c0_16, %c0_17] : memref<2x2xf32, #tpu.memory_space<vmem>>, vector<2x2xf32>
    tpu.vector_store %arg8[%c0_16, %c0_17], %47 {strides = array<i32>} : memref<2x2xf32, #tpu.memory_space<vmem>>, vector<2x2xf32>,
    return
  }
  func.func @transform_0(%arg0: i32) -> (i32, i32) {
    %c0_i32 = arith.constant 0 : i32
    %c0_i32_0 = arith.constant 0 : i32
    return %arg0, %c0_i32 : i32, i32
  }
  func.func @transform_1(%arg0: i32) -> (i32, i32) {
    %c0_i32 = arith.constant 0 : i32
    %c0_i32_0 = arith.constant 0 : i32
    %c0_i32_1 = arith.constant 0 : i32
    return %c0_i32, %c0_i32_0 : i32, i32
  }
  func.func @transform_2(%arg0: i32) -> (i32, i32) {
    %c0_i32 = arith.constant 0 : i32
    %c0_i32_0 = arith.constant 0 : i32
    %c0_i32_1 = arith.constant 0 : i32
    return %c0_i32, %c0_i32_0 : i32, i32
  }
  func.func @transform_3(%arg0: i32) -> (i32, i32) {
    %c0_i32 = arith.constant 0 : i32
    %c0_i32_0 = arith.constant 0 : i32
    %c0_i32_1 = arith.constant 0 : i32
    return %c0_i32, %c0_i32_0 : i32, i32
  }
  func.func @transform_4(%arg0: i32) -> (i32, i32) {
    %c0_i32 = arith.constant 0 : i32
    %c0_i32_0 = arith.constant 0 : i32
    %c0_i32_1 = arith.constant 0 : i32
    return %c0_i32, %c0_i32_0 : i32, i32
  }
  func.func @transform_5(%arg0: i32) -> (i32, i32) {
    %c0_i32 = arith.constant 0 : i32
    %c0_i32_0 = arith.constant 0 : i32
    %c0_i32_1 = arith.constant 0 : i32
    return %c0_i32, %c0_i32_0 : i32, i32
  }
  func.func @transform_6(%arg0: i32) -> (i32, i32) {
    %c0_i32 = arith.constant 0 : i32
    %c0_i32_0 = arith.constant 0 : i32
    %c0_i32_1 = arith.constant 0 : i32
    return %c0_i32, %c0_i32_0 : i32, i32
  }
  func.func @transform_7(%arg0: i32) -> (i32, i32) {
    %c0_i32 = arith.constant 0 : i32
    %c0_i32_0 = arith.constant 0 : i32
    return %arg0, %c0_i32 : i32, i32
  }
}

</mosaic_0001>

<llo_original>
// kernel: tpu_custom_call.1
$region0: #{tpu_custom_call.1}
  #allocation0 [shape = 'u32[]', space=smem, size = 0x4, offset = 0x4, fixed_abs, tag = 'smem constant byte address 0x4 - core index']
  #allocation1 [shape = 'u32[144,128]{1,0:T(1,128)}', space=vmem, size = 0x12000, scoped, tag = 'internal scratch']
  %s0 = inlined_call_operand.hbm [shape: f32[2,4], index: 0, kind: input, shape index: {}]
  %s1 = inlined_call_operand.vmem [shape: bf16[4,128], index: 1, kind: input, shape index: {}]
  %s2 = inlined_call_operand.vmem [shape: bf16[1,128], index: 2, kind: input, shape index: {}]
  %s3 = inlined_call_operand.hbm [shape: bf16[128,128], index: 3, kind: input, shape index: {}]
  %s4 = inlined_call_operand.vmem [shape: f32[1,128], index: 4, kind: input, shape index: {}]
  %s5 = inlined_call_operand.hbm [shape: bf16[128,128], index: 5, kind: input, shape index: {}]
  %s6 = inlined_call_operand.vmem [shape: f32[1,128], index: 6, kind: input, shape index: {}]
  %s7 = inlined_call_operand.hbm [shape: f32[2,2], index: 7, kind: output, shape index: {}]
  %s8 = sld [smem:[#allocation0]]
  $region50: #{tpu_custom_call.1} parent=0
    _
  %s10 = ssub.s32 1, %s8
  %s11 = scalar_select 0, %s10, %s8
  $region1: #{tpu_custom_call.1} parent=0
    #allocation2 [shape = 'u8[1024]{0}', space=vmem, size = 0x400, scoped, tag = 'input window, operand 0, single buffered']
    #allocation3 [shape = 's32[1]{0}', space=sflag, size = 0x4, scoped, tag = 'scoped memory for tpu_custom_call.1']
    #allocation4 [shape = 's32[1]{0}', space=sflag, size = 0x4, scoped, tag = 'scoped memory for tpu_custom_call.1']
    #allocation5 [shape = 'u8[32768]{0}', space=vmem, size = 0x8000, scoped, tag = 'input window, operand 3, single buffered']
    #allocation6 [shape = 's32[1]{0}', space=sflag, size = 0x4, scoped, tag = 'scoped memory for tpu_custom_call.1']
    #allocation7 [shape = 'u8[32768]{0}', space=vmem, size = 0x8000, scoped, tag = 'input window, operand 5, single buffered']
    #allocation8 [shape = 'u8[1024]{0}', space=vmem, size = 0x400, scoped, tag = 'output window, operand 0, single buffered']
    %12 = vsyncpa [#allocation3], 0
    %13 = vsyncpa [#allocation6], 0
    %14 = vsyncpa [#allocation4], 0
    // Predicated region
    $region2: #{tpu_custom_call.1} parent=1 // pred_check
      _
    $region3: #{tpu_custom_call.1} parent=1 // pred_check_branch
      %16 = sbr.rel (0) target = $region5
    $region4: #{tpu_custom_call.1} parent=1 // pred_region
      %s18 = ssub.s32 32, 32
      %19 = vsyncadd [#allocation3], %s18
      %s21 = sshll.u32 [#allocation2], 4
      %s22 = int_to_ptr.vmem [resolvable:$true] %s21
      %24 = dma.hbm_to_vmem [thread:$0]  %s0, 32, %s22, [#allocation3]
    $region5: #{tpu_custom_call.1} parent=1 // pred_fallthru
      _
    // Predicated region
    $region6: #{tpu_custom_call.1} parent=1 // pred_check
      _
    $region7: #{tpu_custom_call.1} parent=1 // pred_check_branch
      %26 = sbr.rel (0) target = $region9
    $region8: #{tpu_custom_call.1} parent=1 // pred_region
      _
    $region9: #{tpu_custom_call.1} parent=1 // pred_fallthru
      _
    // Predicated region
    $region10: #{tpu_custom_call.1} parent=1 // pred_check
      _
    $region11: #{tpu_custom_call.1} parent=1 // pred_check_branch
      %28 = sbr.rel (0) target = $region13
    $region12: #{tpu_custom_call.1} parent=1 // pred_region
      _
    $region13: #{tpu_custom_call.1} parent=1 // pred_fallthru
      _
    // Predicated region
    $region14: #{tpu_custom_call.1} parent=1 // pred_check
      _
    $region15: #{tpu_custom_call.1} parent=1 // pred_check_branch
      %30 = sbr.rel (0) target = $region17
    $region16: #{tpu_custom_call.1} parent=1 // pred_region
      %s32 = ssub.s32 1024, 1024
      %33 = vsyncadd [#allocation6], %s32
      %s34 = sshll.u32 [#allocation5], 4
      %s35 = int_to_ptr.vmem [resolvable:$true] %s34
      %40 = dma.hbm_to_vmem [thread:$0]  %s3, 1024, %s35, [#allocation6], 64, 64, 4
    $region17: #{tpu_custom_call.1} parent=1 // pred_fallthru
      _
    // Predicated region
    $region18: #{tpu_custom_call.1} parent=1 // pred_check
      _
    $region19: #{tpu_custom_call.1} parent=1 // pred_check_branch
      %42 = sbr.rel (0) target = $region21
    $region20: #{tpu_custom_call.1} parent=1 // pred_region
      _
    $region21: #{tpu_custom_call.1} parent=1 // pred_fallthru
      _
    // Predicated region
    $region22: #{tpu_custom_call.1} parent=1 // pred_check
      _
    $region23: #{tpu_custom_call.1} parent=1 // pred_check_branch
      %44 = sbr.rel (0) target = $region25
    $region24: #{tpu_custom_call.1} parent=1 // pred_region
      %s46 = ssub.s32 1024, 1024
      %47 = vsyncadd [#allocation6], %s46
      %s48 = sshll.u32 [#allocation7], 4
      %s49 = int_to_ptr.vmem [resolvable:$true] %s48
      %54 = dma.hbm_to_vmem [thread:$0]  %s5, 1024, %s49, [#allocation6], 64, 64, 4
    $region25: #{tpu_custom_call.1} parent=1 // pred_fallthru
      _
    // Predicated region
    $region26: #{tpu_custom_call.1} parent=1 // pred_check
      _
    $region27: #{tpu_custom_call.1} parent=1 // pred_check_branch
      %56 = sbr.rel (0) target = $region29
    $region28: #{tpu_custom_call.1} parent=1 // pred_region
      _
    $region29: #{tpu_custom_call.1} parent=1 // pred_fallthru
      _
    // Predicated region
    $region30: #{tpu_custom_call.1} parent=1 // pred_check
      _
    $region31: #{tpu_custom_call.1} parent=1 // pred_check_branch
      %58 = sbr.rel (0) target = $region33
    $region32: #{tpu_custom_call.1} parent=1 // pred_region
      %59 = dma.done [#allocation3], 32
    $region33: #{tpu_custom_call.1} parent=1 // pred_fallthru
      _
    // Predicated region
    $region34: #{tpu_custom_call.1} parent=1 // pred_check
      _
    $region35: #{tpu_custom_call.1} parent=1 // pred_check_branch
      %61 = sbr.rel (0) target = $region37
    $region36: #{tpu_custom_call.1} parent=1 // pred_region
      %62 = dma.done [#allocation6], 1024
    $region37: #{tpu_custom_call.1} parent=1 // pred_fallthru
      _
    // Predicated region
    $region38: #{tpu_custom_call.1} parent=1 // pred_check
      _
    $region39: #{tpu_custom_call.1} parent=1 // pred_check_branch
      %64 = sbr.rel (0) target = $region41
    $region40: #{tpu_custom_call.1} parent=1 // pred_region
      %65 = dma.done [#allocation6], 1024
    $region41: #{tpu_custom_call.1} parent=1 // pred_fallthru
      _
    %v67 = vld [vmem:[#allocation2] sm:$0x3]
    %v68 = vld [vmem:[%s1] sm:$0x3]
    %v69 = vpack.c.bf16 %v67, %v67
    %71 = vset.pattern.permute.xlu0 0
    %72 = vperm.xlu0 %71, %v69
    %v73 = vpop.permute.xlu0 %72
    %v76 = vpack.i.b16 %v68, %v68
    %v78 = vlaneseq
    %v79 = vshrl.u32 %v78, 7
    %v80 = vsub.s32 0, %v79
    %v81 = vrot.slane %v76, %v80
    %v82 = vmul.bf16 %v73, %v81
    %83 = vset.pattern.permute.xlu0 1
    %84 = vperm.xlu0 %83, %v69
    %v85 = vpop.permute.xlu0 %84
    %v87 = vshrl.u32 %v68, 16
    %v88 = vpack.i.b16 %v87, %v87
    %v90 = vlaneseq
    %v91 = vshrl.u32 %v90, 7
    %v92 = vsub.s32 0, %v91
    %v93 = vrot.slane %v88, %v92
    %v94 = vmul.bf16 %v85, %v93
    %v95 = vadd.bf16 %v82, %v94
    %96 = vset.pattern.permute.xlu0 2
    %97 = vperm.xlu0 %96, %v69
    %v98 = vpop.permute.xlu0 %97
    %v100 = vlaneseq
    %v101 = vshrl.u32 %v100, 7
    %v102 = vsub.s32 1, %v101
    %v103 = vrot.slane %v76, %v102
    %v104 = vmul.bf16 %v98, %v103
    %v105 = vadd.bf16 %v95, %v104
    %106 = vset.pattern.permute.xlu0 3
    %107 = vperm.xlu0 %106, %v69
    %v108 = vpop.permute.xlu0 %107
    %v110 = vlaneseq
    %v111 = vshrl.u32 %v110, 7
    %v112 = vsub.s32 1, %v111
    %v113 = vrot.slane %v88, %v112
    %v114 = vmul.bf16 %v108, %v113
    %v115 = vadd.bf16 %v105, %v114
    %v116 = vld [vmem:[%s2] sm:$0x1]
    %v118 = vpack.i.b16 %v116, %v116
    %v120 = vlaneseq
    %v121 = vshrl.u32 %v120, 7
    %v122 = vsub.s32 0, %v121
    %v123 = vrot.slane %v118, %v122
    %v124 = vadd.bf16 %v115, %v123
    %v125 = vmax.bf16 %v124, 0
    %v126 = vld [vmem:[#allocation5] sm:$0xf]
    %v127 = vld [vmem:[#allocation5 + $0x4] sm:$0xf]
    %v128 = vld [vmem:[#allocation5 + $0x8] sm:$0xf]
    %v129 = vld [vmem:[#allocation5 + $0xc] sm:$0xf]
    %v130 = vld [vmem:[#allocation5 + $0x10] sm:$0xf]
    %v131 = vld [vmem:[#allocation5 + $0x14] sm:$0xf]
    %v132 = vld [vmem:[#allocation5 + $0x18] sm:$0xf]
    %v133 = vld [vmem:[#allocation5 + $0x1c] sm:$0xf]
    %v134 = vld [vmem:[#allocation5 + $0x20] sm:$0xf]
    %v135 = vld [vmem:[#allocation5 + $0x24] sm:$0xf]
    %v136 = vld [vmem:[#allocation5 + $0x28] sm:$0xf]
    %v137 = vld [vmem:[#allocation5 + $0x2c] sm:$0xf]
    %v138 = vld [vmem:[#allocation5 + $0x30] sm:$0xf]
    %v139 = vld [vmem:[#allocation5 + $0x34] sm:$0xf]
    %v140 = vld [vmem:[#allocation5 + $0x38] sm:$0xf]
    %v141 = vld [vmem:[#allocation5 + $0x3c] sm:$0xf]
    %v142 = vld [vmem:[%s4] sm:$0x1]
    %v144 = vlaneseq
    %v145 = vshrl.u32 %v144, 7
    %v146 = vsub.s32 0, %v145
    %v147 = vrot.slane %v142, %v146
    %v165 = vunpack.c.l.b16 %v126
    %v166 = vunpack.c.l.b16 %v127
    %v167 = vunpack.c.l.b16 %v128
    %v168 = vunpack.c.l.b16 %v129
    %v169 = vunpack.c.l.b16 %v130
    %v170 = vunpack.c.l.b16 %v131
    %v171 = vunpack.c.l.b16 %v132
    %v172 = vunpack.c.l.b16 %v133
    %v173 = vunpack.c.l.b16 %v134
    %v174 = vunpack.c.l.b16 %v135
    %v175 = vunpack.c.l.b16 %v136
    %v176 = vunpack.c.l.b16 %v137
    %v177 = vunpack.c.l.b16 %v138
    %v178 = vunpack.c.l.b16 %v139
    %v179 = vunpack.c.l.b16 %v140
    %v180 = vunpack.c.l.b16 %v141
    %v181 = vpack.c.b16 %v166, %v165
    %v182 = vpack.c.b16 %v168, %v167
    %v183 = vpack.c.b16 %v170, %v169
    %v184 = vpack.c.b16 %v172, %v171
    %v185 = vpack.c.b16 %v174, %v173
    %v186 = vpack.c.b16 %v176, %v175
    %v187 = vpack.c.b16 %v178, %v177
    %v188 = vpack.c.b16 %v180, %v179
    %197 = vmatprep.subr.bf16.mxu0 0
    %198 = vmatpush1.bf16.msra.mxu0 %v181
    %199 = vmatprep.subr.bf16.mxu0 0
    %200 = vmatpush1.bf16.msra.mxu0 %v182
    %201 = vmatprep.subr.bf16.mxu0 0
    %202 = vmatpush1.bf16.msra.mxu0 %v183
    %203 = vmatprep.subr.bf16.mxu0 0
    %204 = vmatpush1.bf16.msra.mxu0 %v184
    %205 = vmatprep.subr.bf16.mxu0 0
    %206 = vmatpush1.bf16.msra.mxu0 %v185
    %207 = vmatprep.subr.bf16.mxu0 0
    %208 = vmatpush1.bf16.msra.mxu0 %v186
    %209 = vmatprep.subr.bf16.mxu0 0
    %210 = vmatpush1.bf16.msra.mxu0 %v187
    %211 = vmatprep.subr.bf16.mxu0 0
    %212 = vmatpush1.bf16.msra.mxu0 %v188
    %213 = vmatprep.subr.bf16.mxu0 0
    %214 = vmatpush1.bf16.msra.mxu0 0
    %215 = vmatprep.subr.bf16.mxu0 0
    %216 = vmatpush1.bf16.msra.mxu0 0
    %217 = vmatprep.subr.bf16.mxu0 0
    %218 = vmatpush1.bf16.msra.mxu0 0
    %219 = vmatprep.subr.bf16.mxu0 0
    %220 = vmatpush1.bf16.msra.mxu0 0
    %221 = vmatprep.subr.bf16.mxu0 0
    %222 = vmatpush1.bf16.msra.mxu0 0
    %223 = vmatprep.subr.bf16.mxu0 0
    %224 = vmatpush1.bf16.msra.mxu0 0
    %225 = vmatprep.subr.bf16.mxu0 0
    %226 = vmatpush1.bf16.msra.mxu0 0
    %227 = vmatprep.subr.bf16.mxu0 0
    %228 = vmatpush1.bf16.msra.mxu0 0
    %229 = vmatprep.mubr.bf16.mxu0 0
    %230 = vmatmul.mubr.bf16.gmra.mrb[0].mxu0 %v125
    %v231 = vpop.f32.mrb[0].mxu0
    %v232 = vadd.f32 %v147, %v231
    %v233 = vpop.f32.mrb[0].mxu0
    %v234 = vpop.f32.mrb[0].mxu0
    %v235 = vpop.f32.mrb[0].mxu0
    %236 = vdwg.mxu0
    %v237 = vmax.f32 %v232, 0.0
    %v238 = vpack.c.bf16 %v237, %v237
    %v239 = vld [vmem:[#allocation7] sm:$0xf]
    %v240 = vld [vmem:[#allocation7 + $0x4] sm:$0xf]
    %v241 = vld [vmem:[#allocation7 + $0x8] sm:$0xf]
    %v242 = vld [vmem:[#allocation7 + $0xc] sm:$0xf]
    %v243 = vld [vmem:[#allocation7 + $0x10] sm:$0xf]
    %v244 = vld [vmem:[#allocation7 + $0x14] sm:$0xf]
    %v245 = vld [vmem:[#allocation7 + $0x18] sm:$0xf]
    %v246 = vld [vmem:[#allocation7 + $0x1c] sm:$0xf]
    %v247 = vld [vmem:[#allocation7 + $0x20] sm:$0xf]
    %v248 = vld [vmem:[#allocation7 + $0x24] sm:$0xf]
    %v249 = vld [vmem:[#allocation7 + $0x28] sm:$0xf]
    %v250 = vld [vmem:[#allocation7 + $0x2c] sm:$0xf]
    %v251 = vld [vmem:[#allocation7 + $0x30] sm:$0xf]
    %v252 = vld [vmem:[#allocation7 + $0x34] sm:$0xf]
    %v253 = vld [vmem:[#allocation7 + $0x38] sm:$0xf]
    %v254 = vld [vmem:[#allocation7 + $0x3c] sm:$0xf]
    %v255 = vld [vmem:[%s6] sm:$0x1]
    %v257 = vlaneseq
    %v258 = vshrl.u32 %v257, 7
    %v259 = vsub.s32 0, %v258
    %v260 = vrot.slane %v255, %v259
    %v278 = vunpack.c.l.b16 %v239
    %v279 = vunpack.c.l.b16 %v240
    %v280 = vunpack.c.l.b16 %v241
    %v281 = vunpack.c.l.b16 %v242
    %v282 = vunpack.c.l.b16 %v243
    %v283 = vunpack.c.l.b16 %v244
    %v284 = vunpack.c.l.b16 %v245
    %v285 = vunpack.c.l.b16 %v246
    %v286 = vunpack.c.l.b16 %v247
    %v287 = vunpack.c.l.b16 %v248
    %v288 = vunpack.c.l.b16 %v249
    %v289 = vunpack.c.l.b16 %v250
    %v290 = vunpack.c.l.b16 %v251
    %v291 = vunpack.c.l.b16 %v252
    %v292 = vunpack.c.l.b16 %v253
    %v293 = vunpack.c.l.b16 %v254
    %v294 = vpack.c.b16 %v279, %v278
    %v295 = vpack.c.b16 %v281, %v280
    %v296 = vpack.c.b16 %v283, %v282
    %v297 = vpack.c.b16 %v285, %v284
    %v298 = vpack.c.b16 %v287, %v286
    %v299 = vpack.c.b16 %v289, %v288
    %v300 = vpack.c.b16 %v291, %v290
    %v301 = vpack.c.b16 %v293, %v292
    %310 = vmatprep.subr.bf16.mxu0 0
    %311 = vmatpush1.bf16.msra.mxu0 %v294
    %312 = vmatprep.subr.bf16.mxu0 0
    %313 = vmatpush1.bf16.msra.mxu0 %v295
    %314 = vmatprep.subr.bf16.mxu0 0
    %315 = vmatpush1.bf16.msra.mxu0 %v296
    %316 = vmatprep.subr.bf16.mxu0 0
    %317 = vmatpush1.bf16.msra.mxu0 %v297
    %318 = vmatprep.subr.bf16.mxu0 0
    %319 = vmatpush1.bf16.msra.mxu0 %v298
    %320 = vmatprep.subr.bf16.mxu0 0
    %321 = vmatpush1.bf16.msra.mxu0 %v299
    %322 = vmatprep.subr.bf16.mxu0 0
    %323 = vmatpush1.bf16.msra.mxu0 %v300
    %324 = vmatprep.subr.bf16.mxu0 0
    %325 = vmatpush1.bf16.msra.mxu0 %v301
    %326 = vmatprep.subr.bf16.mxu0 0
    %327 = vmatpush1.bf16.msra.mxu0 0
    %328 = vmatprep.subr.bf16.mxu0 0
    %329 = vmatpush1.bf16.msra.mxu0 0
    %330 = vmatprep.subr.bf16.mxu0 0
    %331 = vmatpush1.bf16.msra.mxu0 0
    %332 = vmatprep.subr.bf16.mxu0 0
    %333 = vmatpush1.bf16.msra.mxu0 0
    %334 = vmatprep.subr.bf16.mxu0 0
    %335 = vmatpush1.bf16.msra.mxu0 0
    %336 = vmatprep.subr.bf16.mxu0 0
    %337 = vmatpush1.bf16.msra.mxu0 0
    %338 = vmatprep.subr.bf16.mxu0 0
    %339 = vmatpush1.bf16.msra.mxu0 0
    %340 = vmatprep.subr.bf16.mxu0 0
    %341 = vmatpush1.bf16.msra.mxu0 0
    %342 = vmatprep.mubr.bf16.mxu0 0
    %343 = vmatmul.mubr.bf16.gmra.mrb[0].mxu0 %v238
    %v344 = vpop.f32.mrb[0].mxu0
    %v345 = vadd.f32 %v260, %v344
    %v346 = vpop.f32.mrb[0].mxu0
    %v347 = vpop.f32.mrb[0].mxu0
    %v348 = vpop.f32.mrb[0].mxu0
    %349 = vdwg.mxu0
    %vm350 = vcmask 9216
    %351 = vst.msk [vmem:[#allocation8] sm:$0x3] %vm350, %v345
    // Predicated region
    $region42: #{tpu_custom_call.1} parent=1 // pred_check
      _
    $region43: #{tpu_custom_call.1} parent=1 // pred_check_branch
      %353 = sbr.rel (0) target = $region45
    $region44: #{tpu_custom_call.1} parent=1 // pred_region
      %s355 = ssub.s32 32, 32
      %356 = vsyncadd [#allocation4], %s355
      %s358 = sshll.u32 [#allocation8], 4
      %s359 = int_to_ptr.vmem [resolvable:$true] %s358
      %361 = dma.vmem_to_hbm [thread:$0]  %s359, 32, %s7, [#allocation4]
    $region45: #{tpu_custom_call.1} parent=1 // pred_fallthru
      _
    // Predicated region
    $region46: #{tpu_custom_call.1} parent=1 // pred_check
      _
    $region47: #{tpu_custom_call.1} parent=1 // pred_check_branch
      %363 = sbr.rel (0) target = $region49
    $region48: #{tpu_custom_call.1} parent=1 // pred_region
      %364 = dma.done [#allocation4], 32
    $region49: #{tpu_custom_call.1} parent=1 // pred_fallthru
      _
    %365 = vsyncpa [#allocation3], 1
    %366 = vsyncpa [#allocation6], 1
    %367 = vsyncpa [#allocation4], 1

</llo_original>
